<compile_context>
chip_gen: v5e
topology: v5e:2x2
jax: 0.10.0
libtpu: 0.0.40
codegen_flags: <defaults>
</compile_context>

<pallas_src>
import functools

import jax
import jax.numpy as jnp
from jax.experimental import pallas as pl
from jax.experimental.pallas import tpu as pltpu


def _round_up(x, m):
    return ((x + m - 1) // m) * m


def _shared_basis_kernel(xf_ref, tf_ref, a_ref, o_ref, *,
                         neg_inv_sigma_t, neg_inv_sigma_d,
                         tn, a_resident, mxu_dtype):
    k = pl.program_id(1)

    @pl.when(k == 0)
    def _init():
        o_ref[...] = jnp.zeros_like(o_ref)

    # ---- feature views (static ref slices; consolidated DMAs) ----
    x_t = xf_ref[:, 0:1]          # (tm, 1)
    x_d = xf_ref[:, 1:2]
    x_c = xf_ref[:, 2:3]
    t_t = tf_ref[0:1, :]          # (1, tn)
    t_d = tf_ref[1:2, :]
    t_c = tf_ref[2:3, :]

    # ---- composite kernel tile (tm, tn): VPU elementwise + one fused exp ----
    diff_t = jnp.abs(x_t - t_t)
    h_t = jnp.minimum(diff_t, 24.0 - diff_t)          # periodic dist, period 24
    diff_d = jnp.abs(x_d - t_d)
    h_d = jnp.minimum(diff_d, 365.0 - diff_d)         # periodic dist, period 365
    k_td = jnp.exp(h_t * neg_inv_sigma_t + h_d * neg_inv_sigma_d)
    K = jnp.where(x_c == t_c, k_td, 0.0).astype(mxu_dtype)

    # ---- basis projection, accumulated straight into the output block ----
    if a_resident:
        start = pl.multiple_of(k * tn, tn)
        a_blk = a_ref[pl.ds(start, tn), :]            # slice of resident A
    else:
        a_blk = a_ref[...]                            # streamed (tn, p_pad) tile

    o_ref[...] += jnp.dot(K, a_blk, preferred_element_type=jnp.float32)


def shared_basis_forward(X, X_train, A, *, sigma_t=4.0, sigma_d=120.0,
                         tm=None, tn=None, resident_a=None,
                         use_bf16_matmul=False):
    """X: (M, 3), X_train: (N, 3), A: (N, p)  ->  (M, p) float32."""
    M = X.shape[0]
    N, p = A.shape

    # Tile sizes: tm multiple of 8 (aim for >=2 parallel M tiles for megacore),
    # tn multiple of 128.
    if tm is None:
        tm = min(512, max(8, _round_up(pl.cdiv(M, 2), 8)))
    if tn is None:
        tn = min(1024, _round_up(N, 128))

    M_pad = _round_up(M, tm)
    N_pad = _round_up(N, tn)
    p_pad = _round_up(p, 128)                  # lane-dense output / A blocks
    m_tiles = M_pad // tm
    n_tiles = N_pad // tn

    mxu_dtype = jnp.bfloat16 if use_bf16_matmul else jnp.float32
    a_bytes = N_pad * p_pad * jnp.dtype(mxu_dtype).itemsize
    if resident_a is None:
        # Keep resident A (incl. possible double buffer) well inside the
        # explicit 32 MiB VMEM budget alongside tile temporaries.
        resident_a = (2 * a_bytes) <= (8 << 20)

    # ---- consolidated, padded operands (glue in plain JAX) ----
    # Padded A rows are zero and padded output rows/cols are sliced off, so
    # padded M/N/p regions never contribute.
    Xf = jnp.pad(X.astype(jnp.float32), ((0, M_pad - M), (0, 0)))             # (M_pad, 3)
    Tf = jnp.pad(X_train.astype(jnp.float32).T, ((0, 0), (0, N_pad - N)))     # (3, N_pad)
    A_pad = jnp.pad(A.astype(jnp.float32),
                    ((0, N_pad - N), (0, p_pad - p))).astype(mxu_dtype)       # (N_pad, p_pad)

    kernel = functools.partial(
        _shared_basis_kernel,
        neg_inv_sigma_t=-1.0 / float(sigma_t),
        neg_inv_sigma_d=-1.0 / float(sigma_d),
        tn=tn, a_resident=resident_a, mxu_dtype=mxu_dtype)

    if resident_a:
        a_spec = pl.BlockSpec((N_pad, p_pad), lambda i, k: (0, 0))   # DMA'd once, stays resident
        a_hbm_reads = 1
    else:
        a_spec = pl.BlockSpec((tn, p_pad), lambda i, k: (k, 0))      # streamed per k tile
        a_hbm_reads = m_tiles

    cost = pl.CostEstimate(
        flops=int(2 * M_pad * N_pad * p_pad + 13 * M_pad * N_pad),
        transcendentals=int(M_pad * N_pad),
        bytes_accessed=int(4 * (3 * M_pad + 3 * N_pad + M_pad * p_pad)
                           + a_hbm_reads * a_bytes),
    )

    out = pl.pallas_call(
        kernel,
        out_shape=jax.ShapeDtypeStruct((M_pad, p_pad), jnp.float32),
        grid_spec=pltpu.PrefetchScalarGridSpec(
            num_scalar_prefetch=0,
            grid=(m_tiles, n_tiles),
            in_specs=[
                pl.BlockSpec((tm, 3), lambda i, k: (i, 0)),   # X features (rows)
                pl.BlockSpec((3, tn), lambda i, k: (0, k)),   # X_train features (cols)
                a_spec,                                       # basis coefficients
            ],
            out_specs=pl.BlockSpec((tm, p_pad), lambda i, k: (i, 0)),
        ),
        compiler_params=pltpu.CompilerParams(
            dimension_semantics=("parallel", "arbitrary"),
            vmem_limit_bytes=32 * 1024 * 1024,
        ),
        cost_estimate=cost,
    )(Xf, Tf, A_pad)

    return out[:M, :p]


def _reference_forward(X, X_train, A, sigma_t=4.0, sigma_d=120.0):
    def pdist(x1, x2, period):
        diff = jnp.abs(x1[:, None] - x2[None, :])
        return jnp.minimum(diff, period - diff)
    t1, d1, c1 = X[:, 0], X[:, 1], X[:, 2]
    t2, d2, c2 = X_train[:, 0], X_train[:, 1], X_train[:, 2]
    K = (jnp.exp(-pdist(t1, t2, 24) / sigma_t)
         * jnp.exp(-pdist(d1, d2, 365) / sigma_d)
         * (c1[:, None] == c2[None, :]).astype(jnp.float32))
    return K @ A


def _make_inputs(key, M, N, p):
    k1, k2, k3, k4, k5, k6, k7 = jax.random.split(key, 7)
    tr_t = jax.random.uniform(k1, (N,), minval=0.0, maxval=24.0)
    tr_d = jax.random.uniform(k2, (N,), minval=0.0, maxval=365.0)
    tr_c = jax.random.randint(k3, (N,), 0, 4).astype(jnp.float32)
    X_train = jnp.stack([tr_t, tr_d, tr_c], axis=1).astype(jnp.float32)
    x_t = jax.random.uniform(k4, (M,), minval=0.0, maxval=24.0)
    x_d = jax.random.uniform(k5, (M,), minval=0.0, maxval=365.0)
    x_c = jax.random.randint(k6, (M,), 0, 4).astype(jnp.float32)
    X = jnp.stack([x_t, x_d, x_c], axis=1).astype(jnp.float32)
    A = jax.random.normal(k7, (N, p), dtype=jnp.float32)
    return X, X_train, A


if __name__ == "__main__":
    key = jax.random.PRNGKey(0)
    ka, kb = jax.random.split(key, 2)

    # Small shapes consistent with the module: 8 test points, 128 train, 16 bases.
    X, X_train, A = _make_inputs(ka, M=8, N=128, p=16)
    out = jax.block_until_ready(shared_basis_forward(X, X_train, A))
    ref = _reference_forward(X, X_train, A)
    assert out.shape == ref.shape
    assert jnp.allclose(out, ref, rtol=1e-5, atol=1e-5), "mismatch (aligned, resident A)"

    # Ragged shapes exercising M/N/p padding, multiple M tiles, and the
    # streamed-A fallback path.
    X2, X_train2, A2 = _make_inputs(kb, M=13, N=200, p=10)
    out2 = jax.block_until_ready(
        shared_basis_forward(X2, X_train2, A2, resident_a=False))
    ref2 = _reference_forward(X2, X_train2, A2)
    assert out2.shape == ref2.shape
    assert jnp.allclose(out2, ref2, rtol=1e-5, atol=1e-5), "mismatch (ragged, streamed A)"

    # Optional bf16 MXU path (looser tolerance; accumulation stays f32).
    out3 = jax.block_until_ready(
        shared_basis_forward(X, X_train, A, use_bf16_matmul=True))
    rel_err = jnp.max(jnp.abs(out3 - ref)) / (jnp.max(jnp.abs(ref)) + 1e-6)
    assert rel_err < 5e-2, "mismatch (bf16 MXU path)"

    print("KERNEL_OK")
</pallas_src>

<mosaic_0001>
module attributes {stable_mosaic.version = 11 : i64} {
  func.func @_shared_basis_kernel(%arg0: i32, %arg1: i32, %arg2: memref<8x3xf32, #tpu.memory_space<vmem>>, %arg3: memref<3x128xf32, #tpu.memory_space<vmem>>, %arg4: memref<128x128xf32, #tpu.memory_space<vmem>>, %arg5: memref<8x128xf32, #tpu.memory_space<vmem>>) attributes {dimension_semantics = [#tpu.dimension_semantics<parallel>, #tpu.dimension_semantics<arbitrary>], iteration_bounds = array<i64: 1, 1>, scalar_prefetch = 0 : i64, scratch_operands = 0 : i64, tpu.core_type = #tpu.core_type<tc>, window_params = [{transform_indices = @transform_0, window_bounds = array<i64: 8, 3>}, {transform_indices = @transform_1, window_bounds = array<i64: 3, 128>}, {pipeline_mode = #tpu.pipeline_mode<synchronous>, transform_indices = @transform_2, window_bounds = array<i64: 128, 128>}, {transform_indices = @transform_3, window_bounds = array<i64: 8, 128>}]} {
    %c0_i32 = arith.constant 0 : i32
    %0 = arith.cmpi eq, %arg1, %c0_i32 : i32
    %1 = arith.extui %0 : i1 to i32
    %c0_i32_0 = arith.constant 0 : i32
    %2 = arith.cmpi ne, %1, %c0_i32_0 : i32
    scf.if %2 {
      %cst_20 = arith.constant 0.000000e+00 : f32
      %42 = vector.broadcast %cst_20 : f32 to vector<8x128xf32>
      %c0_21 = arith.constant 0 : index
      %c0_22 = arith.constant 0 : index
      %43 = vector.load %arg5[%c0_21, %c0_22] : memref<8x128xf32, #tpu.memory_space<vmem>>, vector<8x128xf32>
      tpu.vector_store %arg5[%c0_21, %c0_22], %42 {strides = array<i32>} : memref<8x128xf32, #tpu.memory_space<vmem>>, vector<8x128xf32>,
    } else {
    }
    %c0 = arith.constant 0 : index
    %c0_1 = arith.constant 0 : index
    %3 = vector.load %arg2[%c0, %c0_1] : memref<8x3xf32, #tpu.memory_space<vmem>>, vector<8x1xf32>
    %c0_2 = arith.constant 0 : index
    %c1 = arith.constant 1 : index
    %4 = vector.load %arg2[%c0_2, %c1] : memref<8x3xf32, #tpu.memory_space<vmem>>, vector<8x1xf32>
    %c0_3 = arith.constant 0 : index
    %c2 = arith.constant 2 : index
    %5 = vector.load %arg2[%c0_3, %c2] : memref<8x3xf32, #tpu.memory_space<vmem>>, vector<8x1xf32>
    %c0_4 = arith.constant 0 : index
    %c0_5 = arith.constant 0 : index
    %6 = vector.load %arg3[%c0_4, %c0_5] : memref<3x128xf32, #tpu.memory_space<vmem>>, vector<1x128xf32>
    %c1_6 = arith.constant 1 : index
    %c0_7 = arith.constant 0 : index
    %7 = vector.load %arg3[%c1_6, %c0_7] : memref<3x128xf32, #tpu.memory_space<vmem>>, vector<1x128xf32>
    %c2_8 = arith.constant 2 : index
    %c0_9 = arith.constant 0 : index
    %8 = vector.load %arg3[%c2_8, %c0_9] : memref<3x128xf32, #tpu.memory_space<vmem>>, vector<1x128xf32>
    %9 = vector.broadcast %3 : vector<8x1xf32> to vector<8x128xf32>
    %10 = vector.broadcast %6 : vector<1x128xf32> to vector<8x128xf32>
    %11 = arith.subf %9, %10 : vector<8x128xf32>
    %12 = math.absf %11 : vector<8x128xf32>
    %cst = arith.constant 2.400000e+01 : f32
    %13 = vector.broadcast %cst : f32 to vector<8x128xf32>
    %14 = arith.subf %13, %12 : vector<8x128xf32>
    %15 = arith.minimumf %12, %14 : vector<8x128xf32>
    %16 = vector.broadcast %4 : vector<8x1xf32> to vector<8x128xf32>
    %17 = vector.broadcast %7 : vector<1x128xf32> to vector<8x128xf32>
    %18 = arith.subf %16, %17 : vector<8x128xf32>
    %19 = math.absf %18 : vector<8x128xf32>
    %cst_10 = arith.constant 3.650000e+02 : f32
    %20 = vector.broadcast %cst_10 : f32 to vector<8x128xf32>
    %21 = arith.subf %20, %19 : vector<8x128xf32>
    %22 = arith.minimumf %19, %21 : vector<8x128xf32>
    %cst_11 = arith.constant -2.500000e-01 : f32
    %23 = vector.broadcast %cst_11 : f32 to vector<8x128xf32>
    %24 = arith.mulf %15, %23 : vector<8x128xf32>
    %cst_12 = arith.constant -0.00833333377 : f32
    %25 = vector.broadcast %cst_12 : f32 to vector<8x128xf32>
    %26 = arith.mulf %22, %25 : vector<8x128xf32>
    %27 = arith.addf %24, %26 : vector<8x128xf32>
    %28 = math.exp %27 : vector<8x128xf32>
    %29 = vector.broadcast %5 : vector<8x1xf32> to vector<8x128xf32>
    %30 = vector.broadcast %8 : vector<1x128xf32> to vector<8x128xf32>
    %31 = arith.cmpf oeq, %29, %30 : vector<8x128xf32>
    %cst_13 = arith.constant 0.000000e+00 : f32
    %32 = vector.broadcast %cst_13 : f32 to vector<8x128xf32>
    %33 = arith.select %31, %28, %32 : vector<8x128xi1>, vector<8x128xf32>
    %c128_i32 = arith.constant 128 : i32
    %34 = arith.muli %arg1, %c128_i32 : i32
    %35 = tpu.assume_multiple %34, 128 : i32
    %36 = arith.index_cast %35 : i32 to index
    %c0_14 = arith.constant 0 : index
    %37 = vector.load %arg4[%36, %c0_14] : memref<128x128xf32, #tpu.memory_space<vmem>>, vector<128x128xf32>
    %c0_15 = arith.constant 0 : index
    %c0_16 = arith.constant 0 : index
    %38 = vector.load %arg5[%c0_15, %c0_16] : memref<8x128xf32, #tpu.memory_space<vmem>>, vector<8x128xf32>
    %cst_17 = arith.constant dense<0.000000e+00> : vector<8x128xf32>
    %39 = tpu.matmul %33, %37, %cst_17 {dimension_numbers = #tpu.dot_dimension_numbers<[1], [0], [0], [1], [0, 0, 1, 1], [], []>} : vector<8x128xf32>, vector<128x128xf32>, vector<8x128xf32> -> vector<8x128xf32>
    %40 = arith.addf %38, %39 : vector<8x128xf32>
    %c0_18 = arith.constant 0 : index
    %c0_19 = arith.constant 0 : index
    %41 = vector.load %arg5[%c0_18, %c0_19] : memref<8x128xf32, #tpu.memory_space<vmem>>, vector<8x128xf32>
    tpu.vector_store %arg5[%c0_18, %c0_19], %40 {strides = array<i32>} : memref<8x128xf32, #tpu.memory_space<vmem>>, vector<8x128xf32>,
    return
  }
  func.func @transform_0(%arg0: i32, %arg1: i32) -> (i32, i32) {
    %c0_i32 = arith.constant 0 : i32
    %c0_i32_0 = arith.constant 0 : i32
    return %arg0, %c0_i32 : i32, i32
  }
  func.func @transform_1(%arg0: i32, %arg1: i32) -> (i32, i32) {
    %c0_i32 = arith.constant 0 : i32
    %c0_i32_0 = arith.constant 0 : i32
    return %c0_i32, %arg1 : i32, i32
  }
  func.func @transform_2(%arg0: i32, %arg1: i32) -> (i32, i32) {
    %c0_i32 = arith.constant 0 : i32
    %c0_i32_0 = arith.constant 0 : i32
    %c0_i32_1 = arith.constant 0 : i32
    return %c0_i32, %c0_i32_0 : i32, i32
  }
  func.func @transform_3(%arg0: i32, %arg1: i32) -> (i32, i32) {
    %c0_i32 = arith.constant 0 : i32
    %c0_i32_0 = arith.constant 0 : i32
    return %arg0, %c0_i32 : i32, i32
  }
}

</mosaic_0001>

<llo_original>
// kernel: tpu_custom_call.1
$region0: #{tpu_custom_call.1}
  #allocation0 [shape = 'u32[]', space=smem, size = 0x4, offset = 0x4, fixed_abs, tag = 'smem constant byte address 0x4 - core index']
  #allocation1 [shape = 'u32[72,128]{1,0:T(1,128)}', space=vmem, size = 0x9000, scoped, tag = 'internal scratch']
  %s0 = inlined_call_operand.vmem [shape: f32[8,3], index: 0, kind: input, shape index: {}]
  %s1 = inlined_call_operand.vmem [shape: f32[3,128], index: 1, kind: input, shape index: {}]
  %s2 = inlined_call_operand.hbm [shape: f32[128,128], index: 2, kind: input, shape index: {}]
  %s3 = inlined_call_operand.hbm [shape: f32[8,128], index: 3, kind: output, shape index: {}]
  %s4 = sld [smem:[#allocation0]]
  $region30: #{tpu_custom_call.1} parent=0
    _
  %s6 = ssub.s32 1, %s4
  %s7 = scalar_select 0, %s6, %s4
  $region1: #{tpu_custom_call.1} parent=0
    #allocation2 [shape = 'u8[65536]{0}', space=vmem, size = 0x10000, scoped, tag = 'input window, operand 2, single buffered']
    #allocation3 [shape = 's32[1]{0}', space=sflag, size = 0x4, scoped, tag = 'scoped memory for tpu_custom_call.1']
    #allocation4 [shape = 's32[1]{0}', space=sflag, size = 0x4, scoped, tag = 'scoped memory for tpu_custom_call.1']
    #allocation5 [shape = 'u8[4096]{0}', space=vmem, size = 0x1000, scoped, tag = 'output window, operand 0, single buffered']
    %8 = vsyncpa [#allocation3], 0
    %9 = vsyncpa [#allocation4], 0
    // Predicated region
    $region2: #{tpu_custom_call.1} parent=1 // pred_check
      _
    $region3: #{tpu_custom_call.1} parent=1 // pred_check_branch
      %11 = sbr.rel (0) target = $region5
    $region4: #{tpu_custom_call.1} parent=1 // pred_region
      _
    $region5: #{tpu_custom_call.1} parent=1 // pred_fallthru
      _
    // Predicated region
    $region6: #{tpu_custom_call.1} parent=1 // pred_check
      _
    $region7: #{tpu_custom_call.1} parent=1 // pred_check_branch
      %13 = sbr.rel (0) target = $region9
    $region8: #{tpu_custom_call.1} parent=1 // pred_region
      _
    $region9: #{tpu_custom_call.1} parent=1 // pred_fallthru
      _
    // Predicated region
    $region10: #{tpu_custom_call.1} parent=1 // pred_check
      _
    $region11: #{tpu_custom_call.1} parent=1 // pred_check_branch
      %15 = sbr.rel (0) target = $region13
    $region12: #{tpu_custom_call.1} parent=1 // pred_region
      %17 = vsyncadd [#allocation3], 0
      %s18 = sshll.u32 %s2, 4
      %s19 = int_to_ptr.hbm [resolvable:$true] %s18
      %s20 = sshll.u32 [#allocation2], 4
      %s21 = int_to_ptr.vmem [resolvable:$true] %s20
      %26 = dma.hbm_to_vmem [thread:$0]  %s19, 2048, %s21, [#allocation3], 128, 128, 8
    $region13: #{tpu_custom_call.1} parent=1 // pred_fallthru
      _
    // Predicated region
    $region14: #{tpu_custom_call.1} parent=1 // pred_check
      _
    $region15: #{tpu_custom_call.1} parent=1 // pred_check_branch
      %28 = sbr.rel (0) target = $region17
    $region16: #{tpu_custom_call.1} parent=1 // pred_region
      %30 = dma.done [#allocation3], 2048
    $region17: #{tpu_custom_call.1} parent=1 // pred_fallthru
      _
    %p31 = scmp.eq.s32.totalorder 0, 0
    // Predicated region
    $region18: #{tpu_custom_call.1} parent=1 // pred_check
      %p32 = pneg %p31
    $region19: #{tpu_custom_call.1} parent=1 // pred_check_branch
      %34 = sbr.rel (%p32) target = $region21
    $region20: #{tpu_custom_call.1} parent=1 // pred_region
      %35 = vst [vmem:[#allocation5] sm:$0xff] 0.0
    $region21: #{tpu_custom_call.1} parent=1 // pred_fallthru
      _
    %v36 = vld [vmem:[%s0] sm:$0xff]
    %v37 = vld [vmem:[%s1] sm:$0x1]
    %v38 = vld [vmem:[%s1 + $0x1] sm:$0x1]
    %v39 = vld [vmem:[%s1 + $0x2] sm:$0x1]
    %41 = vset.pattern.permute.xlu0 0
    %42 = vperm.xlu0 %41, %v36
    %v43 = vpop.permute.xlu0 %42
    %v45 = vperm.slane %v37, 0
    %v46 = vsub.f32 %v43, %v45
    %v47 = vand.u32 2147483647, %v46
    %v48 = vsub.f32 24.0, %v47
    %v49 = vmin.f32 %v47, %v48
    %50 = vset.pattern.permute.xlu0 1
    %51 = vperm.xlu0 %50, %v36
    %v52 = vpop.permute.xlu0 %51
    %v54 = vperm.slane %v38, 0
    %v55 = vsub.f32 %v52, %v54
    %v56 = vand.u32 2147483647, %v55
    %v57 = vsub.f32 365.0, %v56
    %v58 = vmin.f32 %v56, %v57
    %v59 = vmul.f32 %v49, -0.25
    %v60 = vmul.f32 %v58, -0.008333334
    %v61 = vadd.f32 %v59, %v60
    %v62 = vmul.f32 %v61, 1.442695
    %v63 = vpow.pop %v62
    %64 = vset.pattern.permute.xlu0 2
    %65 = vperm.xlu0 %64, %v36
    %v66 = vpop.permute.xlu0 %65
    %v68 = vperm.slane %v39, 0
    %vm69 = vcmp.eq.f32.partialorder %v66, %v68
    %v70 = vsel %vm69, %v63, 0.0
    %s71 = smul.u32 0, 128
    %s72 = scalar_lea.vmem [#allocation2], %s71
    %v73 = vld [vmem:[%s72] sm:$0xff]
    %v74 = vld [vmem:[%s72 + $0x8] sm:$0xff]
    %v75 = vld [vmem:[%s72 + $0x10] sm:$0xff]
    %v76 = vld [vmem:[%s72 + $0x18] sm:$0xff]
    %v77 = vld [vmem:[%s72 + $0x20] sm:$0xff]
    %v78 = vld [vmem:[%s72 + $0x28] sm:$0xff]
    %v79 = vld [vmem:[%s72 + $0x30] sm:$0xff]
    %v80 = vld [vmem:[%s72 + $0x38] sm:$0xff]
    %v81 = vld [vmem:[%s72 + $0x40] sm:$0xff]
    %v82 = vld [vmem:[%s72 + $0x48] sm:$0xff]
    %v83 = vld [vmem:[%s72 + $0x50] sm:$0xff]
    %v84 = vld [vmem:[%s72 + $0x58] sm:$0xff]
    %v85 = vld [vmem:[%s72 + $0x60] sm:$0xff]
    %v86 = vld [vmem:[%s72 + $0x68] sm:$0xff]
    %v87 = vld [vmem:[%s72 + $0x70] sm:$0xff]
    %v88 = vld [vmem:[%s72 + $0x78] sm:$0xff]
    %v89 = vld [vmem:[#allocation5] sm:$0xff]
    %90 = vmatpush.msra.mxu0 %v88
    %91 = vmatpush.msra.mxu0 %v87
    %92 = vmatpush.msra.mxu0 %v86
    %93 = vmatpush.msra.mxu0 %v85
    %94 = vmatpush.msra.mxu0 %v84
    %95 = vmatpush.msra.mxu0 %v83
    %96 = vmatpush.msra.mxu0 %v82
    %97 = vmatpush.msra.mxu0 %v81
    %98 = vmatpush.msra.mxu0 %v80
    %99 = vmatpush.msra.mxu0 %v79
    %100 = vmatpush.msra.mxu0 %v78
    %101 = vmatpush.msra.mxu0 %v77
    %102 = vmatpush.msra.mxu0 %v76
    %103 = vmatpush.msra.mxu0 %v75
    %104 = vmatpush.msra.mxu0 %v74
    %105 = vmatpush.msra.mxu0 %v73
    %106 = vmatmul.f32.gmra.mxu0 %v70
    %v107 = vpop.f32.mrf.mxu0
    %v108 = vadd.f32 0.0, %v107
    %109 = vdwg.mxu0
    %v110 = vadd.f32 %v89, %v108
    %111 = vst [vmem:[#allocation5] sm:$0xff] %v110
    // Predicated region
    $region22: #{tpu_custom_call.1} parent=1 // pred_check
      _
    $region23: #{tpu_custom_call.1} parent=1 // pred_check_branch
      %113 = sbr.rel (0) target = $region25
    $region24: #{tpu_custom_call.1} parent=1 // pred_region
      %115 = vsyncadd [#allocation4], 0
      %s117 = sshll.u32 [#allocation5], 4
      %s118 = int_to_ptr.vmem [resolvable:$true] %s117
      %s119 = sshll.u32 %s3, 4
      %s120 = int_to_ptr.hbm [resolvable:$true] %s119
      %122 = dma.vmem_to_hbm [thread:$0]  %s118, 128, %s120, [#allocation4]
    $region25: #{tpu_custom_call.1} parent=1 // pred_fallthru
      _
    // Predicated region
    $region26: #{tpu_custom_call.1} parent=1 // pred_check
      _
    $region27: #{tpu_custom_call.1} parent=1 // pred_check_branch
      %124 = sbr.rel (0) target = $region29
    $region28: #{tpu_custom_call.1} parent=1 // pred_region
      %126 = dma.done [#allocation4], 128
    $region29: #{tpu_custom_call.1} parent=1 // pred_fallthru
      _
    %127 = vsyncpa [#allocation3], 1
    %128 = vsyncpa [#allocation4], 1

</llo_original>
